<compile_context>
chip_gen: v6e
topology: v6e:2x2x1
jax: 0.10.0
libtpu: 0.0.40
codegen_flags: <defaults>
</compile_context>

<pallas_src>
import functools

import jax
import jax.numpy as jnp
from jax.experimental import pallas as pl
from jax.experimental.pallas import tpu as pltpu


def _round_up(n, m):
    return ((n + m - 1) // m) * m


def _fused_mlp_kernel(x_ref, *refs, depth):
    """Whole MLP for one batch tile.

    refs = (w_0, b_0, w_1, b_1, ..., w_{depth-1}, b_{depth-1}, o_ref).
    Each layer: h = h @ W + b  (BN already folded), ReLU on all but last.
    Weights/activations are bf16 into the MXU; accumulation is f32.
    Inter-layer activations stay on-chip (no HBM round trips).
    """
    o_ref = refs[-1]
    h = x_ref[...]                                   # bf16 (tm, D0)
    for i in range(depth):
        w = refs[2 * i][...]                         # bf16 (K_i, N_i_padded)
        b = refs[2 * i + 1][...]                     # f32  (1,  N_i_padded)
        acc = jnp.dot(h, w, preferred_element_type=jnp.float32) + b
        if i < depth - 1:
            acc = jnp.maximum(acc, 0.0)
            h = acc.astype(jnp.bfloat16)             # bf16 into next MXU pass
        else:
            h = acc
    o_ref[...] = h.astype(o_ref.dtype)


def prepare_mlp_params(folded_params):
    """One-time param prep (outside the hot path).

    Pads each layer's output (N) dim to a multiple of 128 (lane-dense) and its
    input (K) dim to the *previous layer's padded output* — except layer 0,
    whose K stays at the true input width so x needs no feature padding.
    Weights are cast to bf16; biases stay f32.
    """
    dims = [folded_params[0][0].shape[0]] + [w.shape[1] for w, _ in folded_params]
    # Per-layer input widths as seen inside the kernel (layer 0 unpadded).
    kin_dims = [dims[0]] + [_round_up(d, 128) for d in dims[1:-1]]
    prepared = []
    for i, (w, b) in enumerate(folded_params):
        din, dout = w.shape
        kin = kin_dims[i]
        nout = _round_up(dout, 128)
        w_p = (jnp.zeros((kin, nout), jnp.float32)
               .at[:din, :dout].set(w).astype(jnp.bfloat16))
        b_p = jnp.zeros((1, nout), jnp.float32).at[:, :dout].set(b)
        prepared.append((w_p, b_p))
    return prepared


@functools.partial(jax.jit, static_argnames=("out_dim", "batch_tile"))
def fused_mlp(x, prepared, *, out_dim, batch_tile=256):
    """x: (B, D0) f32. prepared: list of (W bf16 (Kin, Nout_p), b f32 (1, Nout_p))."""
    B, D0 = x.shape
    depth = len(prepared)
    assert prepared[0][0].shape[0] == D0

    # ---- batch tiling ------------------------------------------------------
    b8 = _round_up(B, 8)
    tm = min(batch_tile, b8)
    if b8 // tm < 2 and b8 >= 16:
        # Guarantee >= 2 grid steps so the "parallel" axis feeds both v7x TCs.
        tm = max(8, (b8 // 2) // 8 * 8)
    bp = _round_up(b8, tm)

    x_bf = x.astype(jnp.bfloat16)
    if bp != B:
        x_bf = jnp.pad(x_bf, ((0, bp - B), (0, 0)))   # batch pad only; fuses under jit

    # ---- specs -------------------------------------------------------------
    flat_inputs = [x_bf]
    in_specs = [pl.BlockSpec((tm, D0), lambda i: (i, 0))]   # last dim == full dim -> legal
    for (w_p, b_p) in prepared:
        flat_inputs += [w_p, b_p]
        in_specs += [
            pl.BlockSpec(w_p.shape, lambda i: (0, 0)),      # fully VMEM-resident
            pl.BlockSpec(b_p.shape, lambda i: (0, 0)),
        ]
    out_dim_p = prepared[-1][0].shape[1]

    # ---- VMEM budget (resident weights + double-buffered streamed tiles) ----
    resident_bytes = sum(int(w.size) * w.dtype.itemsize + int(b.size) * b.dtype.itemsize
                         for (w, b) in prepared)
    stream_bytes = tm * D0 * 2 + tm * out_dim_p * 4          # x tile (bf16) + out tile (f32)
    widest = max(int(w.shape[1]) for (w, _) in prepared)
    interm_bytes = 2 * tm * widest * 4                        # live f32 h + bf16 copy (rough)
    vmem_needed = 2 * (resident_bytes + stream_bytes) + interm_bytes
    assert vmem_needed < 48 * 1024 * 1024, (
        "resident-weight design exceeds VMEM budget; needs K/N-tiled fallback "
        f"(needed ~{vmem_needed} bytes)")
    vmem_limit = min(64 * 1024 * 1024, max(32 * 1024 * 1024, 2 * vmem_needed))

    # ---- cost estimate (bf16 bytes, unpadded first-layer K) -----------------
    flops = 2 * bp * sum(int(w.shape[0]) * int(w.shape[1]) for (w, _) in prepared)
    bytes_accessed = (sum(int(a.size) * a.dtype.itemsize for a in flat_inputs)
                      + bp * out_dim_p * 4)

    kernel = functools.partial(_fused_mlp_kernel, depth=depth)
    out_p = pl.pallas_call(
        kernel,
        out_shape=jax.ShapeDtypeStruct((bp, out_dim_p), jnp.float32),
        grid=(bp // tm,),
        in_specs=in_specs,
        out_specs=pl.BlockSpec((tm, out_dim_p), lambda i: (i, 0)),
        compiler_params=pltpu.CompilerParams(
            dimension_semantics=("parallel",),    # batch tiles -> both TCs on v7x
            vmem_limit_bytes=vmem_limit),
        cost_estimate=pl.CostEstimate(
            flops=flops, transcendentals=0, bytes_accessed=bytes_accessed),
    )(*flat_inputs)

    # Padding strip fuses into the jitted computation (no extra dispatch).
    return out_p[:B, :out_dim]


def init_mlp_params(key, width_list):
    """PyTorch-shaped params: (W^T, b, gamma, beta, running_mean, running_var)."""
    depth = len(width_list) - 1
    raw = []
    for i in range(depth):
        din, dout = width_list[i], width_list[i + 1]
        key, kw, kb, kg, kbeta, km, kv = jax.random.split(key, 7)
        bound = 1.0 / jnp.sqrt(din)
        wt = jax.random.uniform(kw, (din, dout), jnp.float32, -bound, bound)
        b = jax.random.uniform(kb, (dout,), jnp.float32, -bound, bound)
        gamma = 1.0 + 0.1 * jax.random.normal(kg, (din,), jnp.float32)
        beta = 0.1 * jax.random.normal(kbeta, (din,), jnp.float32)
        rmean = 0.1 * jax.random.normal(km, (din,), jnp.float32)
        rvar = 1.0 + 0.1 * jax.random.uniform(kv, (din,), jnp.float32)
        raw.append((wt, b, gamma, beta, rmean, rvar))
    return raw


def fold_bn_into_linear(raw_params, eps=1e-5):
    """Eval-mode BN folded into the following Linear: one-time precompute."""
    folded = []
    for (wt, b, gamma, beta, rmean, rvar) in raw_params:
        scale = gamma / jnp.sqrt(rvar + eps)          # (din,)
        shift = beta - rmean * scale                  # (din,)
        w_f = scale[:, None] * wt                     # (din, dout)
        b_f = (shift @ wt + b)[None, :]               # (1, dout)
        folded.append((w_f, b_f))
    return folded


def mlp_reference(x, raw_params, eps=1e-5):
    """Pure-JAX f32 reference: BN(eval) -> Linear -> ReLU (no ReLU on last)."""
    depth = len(raw_params)
    h = x
    for i, (wt, b, gamma, beta, rmean, rvar) in enumerate(raw_params):
        h = (h - rmean) / jnp.sqrt(rvar + eps) * gamma + beta
        h = h @ wt + b
        if i < depth - 1:
            h = jnp.maximum(h, 0.0)
    return h


if __name__ == "__main__":
    # Small shapes consistent with the module: width_list defines the MLP.
    width_list = [32, 64, 48, 16]

    key = jax.random.PRNGKey(0)
    key, kx = jax.random.split(key)

    raw_params = init_mlp_params(key, width_list)
    folded_params = fold_bn_into_linear(raw_params)
    prepared = prepare_mlp_params(folded_params)      # one-time pad + bf16 cast

    # batch=8: single tile; batch=200: exercises batch padding + >=2 grid steps.
    for batch in (8, 200):
        kx, sub = jax.random.split(kx)
        x = jax.random.normal(sub, (batch, width_list[0]), jnp.float32)

        out = fused_mlp(x, prepared, out_dim=width_list[-1])
        jax.block_until_ready(out)
        assert out.shape == (batch, width_list[-1])

        # Correctness check against plain-JAX f32 (unfolded) reference.
        # Tolerance loosened for bf16 weights/activations (f32 accumulation).
        ref = mlp_reference(x, raw_params)
        err = float(jnp.max(jnp.abs(out - ref)))
        assert jnp.allclose(out, ref, atol=5e-2, rtol=5e-2), err

    print("KERNEL_OK")
</pallas_src>

<mosaic_0001>
module attributes {stable_mosaic.version = 11 : i64} {
  func.func @_fused_mlp_kernel(%arg0: i32, %arg1: memref<8x32xbf16, #tpu.memory_space<vmem>>, %arg2: memref<32x128xbf16, #tpu.memory_space<vmem>>, %arg3: memref<1x128xf32, #tpu.memory_space<vmem>>, %arg4: memref<128x128xbf16, #tpu.memory_space<vmem>>, %arg5: memref<1x128xf32, #tpu.memory_space<vmem>>, %arg6: memref<128x128xbf16, #tpu.memory_space<vmem>>, %arg7: memref<1x128xf32, #tpu.memory_space<vmem>>, %arg8: memref<8x128xf32, #tpu.memory_space<vmem>>) attributes {dimension_semantics = [#tpu.dimension_semantics<parallel>], iteration_bounds = array<i64: 1>, scalar_prefetch = 0 : i64, scratch_operands = 0 : i64, tpu.core_type = #tpu.core_type<tc>, window_params = [{transform_indices = @transform_0, window_bounds = array<i64: 8, 32>}, {pipeline_mode = #tpu.pipeline_mode<synchronous>, transform_indices = @transform_1, window_bounds = array<i64: 32, 128>}, {pipeline_mode = #tpu.pipeline_mode<synchronous>, transform_indices = @transform_2, window_bounds = array<i64: 1, 128>}, {pipeline_mode = #tpu.pipeline_mode<synchronous>, transform_indices = @transform_3, window_bounds = array<i64: 128, 128>}, {pipeline_mode = #tpu.pipeline_mode<synchronous>, transform_indices = @transform_4, window_bounds = array<i64: 1, 128>}, {pipeline_mode = #tpu.pipeline_mode<synchronous>, transform_indices = @transform_5, window_bounds = array<i64: 128, 128>}, {pipeline_mode = #tpu.pipeline_mode<synchronous>, transform_indices = @transform_6, window_bounds = array<i64: 1, 128>}, {transform_indices = @transform_7, window_bounds = array<i64: 8, 128>}]} {
    %c0 = arith.constant 0 : index
    %c0_0 = arith.constant 0 : index
    %0 = vector.load %arg1[%c0, %c0_0] : memref<8x32xbf16, #tpu.memory_space<vmem>>, vector<8x32xbf16>
    %c0_1 = arith.constant 0 : index
    %c0_2 = arith.constant 0 : index
    %1 = vector.load %arg2[%c0_1, %c0_2] : memref<32x128xbf16, #tpu.memory_space<vmem>>, vector<32x128xbf16>
    %c0_3 = arith.constant 0 : index
    %c0_4 = arith.constant 0 : index
    %2 = vector.load %arg3[%c0_3, %c0_4] : memref<1x128xf32, #tpu.memory_space<vmem>>, vector<1x128xf32>
    %cst = arith.constant dense<0.000000e+00> : vector<8x128xf32>
    %3 = tpu.matmul %0, %1, %cst {dimension_numbers = #tpu.dot_dimension_numbers<[1], [0], [0], [1], [0, 0, 1, 1], [], []>} : vector<8x32xbf16>, vector<32x128xbf16>, vector<8x128xf32> -> vector<8x128xf32>
    %4 = vector.broadcast %2 : vector<1x128xf32> to vector<8x128xf32>
    %5 = arith.addf %3, %4 : vector<8x128xf32>
    %cst_5 = arith.constant 0.000000e+00 : f32
    %6 = vector.broadcast %cst_5 : f32 to vector<8x128xf32>
    %7 = arith.maximumf %5, %6 : vector<8x128xf32>
    %8 = arith.truncf %7 : vector<8x128xf32> to vector<8x128xbf16>
    %c0_6 = arith.constant 0 : index
    %c0_7 = arith.constant 0 : index
    %9 = vector.load %arg4[%c0_6, %c0_7] : memref<128x128xbf16, #tpu.memory_space<vmem>>, vector<128x128xbf16>
    %c0_8 = arith.constant 0 : index
    %c0_9 = arith.constant 0 : index
    %10 = vector.load %arg5[%c0_8, %c0_9] : memref<1x128xf32, #tpu.memory_space<vmem>>, vector<1x128xf32>
    %cst_10 = arith.constant dense<0.000000e+00> : vector<8x128xf32>
    %11 = tpu.matmul %8, %9, %cst_10 {dimension_numbers = #tpu.dot_dimension_numbers<[1], [0], [0], [1], [0, 0, 1, 1], [], []>} : vector<8x128xbf16>, vector<128x128xbf16>, vector<8x128xf32> -> vector<8x128xf32>
    %12 = vector.broadcast %10 : vector<1x128xf32> to vector<8x128xf32>
    %13 = arith.addf %11, %12 : vector<8x128xf32>
    %cst_11 = arith.constant 0.000000e+00 : f32
    %14 = vector.broadcast %cst_11 : f32 to vector<8x128xf32>
    %15 = arith.maximumf %13, %14 : vector<8x128xf32>
    %16 = arith.truncf %15 : vector<8x128xf32> to vector<8x128xbf16>
    %c0_12 = arith.constant 0 : index
    %c0_13 = arith.constant 0 : index
    %17 = vector.load %arg6[%c0_12, %c0_13] : memref<128x128xbf16, #tpu.memory_space<vmem>>, vector<128x128xbf16>
    %c0_14 = arith.constant 0 : index
    %c0_15 = arith.constant 0 : index
    %18 = vector.load %arg7[%c0_14, %c0_15] : memref<1x128xf32, #tpu.memory_space<vmem>>, vector<1x128xf32>
    %cst_16 = arith.constant dense<0.000000e+00> : vector<8x128xf32>
    %19 = tpu.matmul %16, %17, %cst_16 {dimension_numbers = #tpu.dot_dimension_numbers<[1], [0], [0], [1], [0, 0, 1, 1], [], []>} : vector<8x128xbf16>, vector<128x128xbf16>, vector<8x128xf32> -> vector<8x128xf32>
    %20 = vector.broadcast %18 : vector<1x128xf32> to vector<8x128xf32>
    %21 = arith.addf %19, %20 : vector<8x128xf32>
    %c0_17 = arith.constant 0 : index
    %c0_18 = arith.constant 0 : index
    %22 = vector.load %arg8[%c0_17, %c0_18] : memref<8x128xf32, #tpu.memory_space<vmem>>, vector<8x128xf32>
    tpu.vector_store %arg8[%c0_17, %c0_18], %21 {strides = array<i32>} : memref<8x128xf32, #tpu.memory_space<vmem>>, vector<8x128xf32>,
    return
  }
  func.func @transform_0(%arg0: i32) -> (i32, i32) {
    %c0_i32 = arith.constant 0 : i32
    %c0_i32_0 = arith.constant 0 : i32
    return %arg0, %c0_i32 : i32, i32
  }
  func.func @transform_1(%arg0: i32) -> (i32, i32) {
    %c0_i32 = arith.constant 0 : i32
    %c0_i32_0 = arith.constant 0 : i32
    %c0_i32_1 = arith.constant 0 : i32
    return %c0_i32, %c0_i32_0 : i32, i32
  }
  func.func @transform_2(%arg0: i32) -> (i32, i32) {
    %c0_i32 = arith.constant 0 : i32
    %c0_i32_0 = arith.constant 0 : i32
    %c0_i32_1 = arith.constant 0 : i32
    return %c0_i32, %c0_i32_0 : i32, i32
  }
  func.func @transform_3(%arg0: i32) -> (i32, i32) {
    %c0_i32 = arith.constant 0 : i32
    %c0_i32_0 = arith.constant 0 : i32
    %c0_i32_1 = arith.constant 0 : i32
    return %c0_i32, %c0_i32_0 : i32, i32
  }
  func.func @transform_4(%arg0: i32) -> (i32, i32) {
    %c0_i32 = arith.constant 0 : i32
    %c0_i32_0 = arith.constant 0 : i32
    %c0_i32_1 = arith.constant 0 : i32
    return %c0_i32, %c0_i32_0 : i32, i32
  }
  func.func @transform_5(%arg0: i32) -> (i32, i32) {
    %c0_i32 = arith.constant 0 : i32
    %c0_i32_0 = arith.constant 0 : i32
    %c0_i32_1 = arith.constant 0 : i32
    return %c0_i32, %c0_i32_0 : i32, i32
  }
  func.func @transform_6(%arg0: i32) -> (i32, i32) {
    %c0_i32 = arith.constant 0 : i32
    %c0_i32_0 = arith.constant 0 : i32
    %c0_i32_1 = arith.constant 0 : i32
    return %c0_i32, %c0_i32_0 : i32, i32
  }
  func.func @transform_7(%arg0: i32) -> (i32, i32) {
    %c0_i32 = arith.constant 0 : i32
    %c0_i32_0 = arith.constant 0 : i32
    return %arg0, %c0_i32 : i32, i32
  }
}

</mosaic_0001>

<llo_original>
// kernel: fused_mlp.1
$region0: #{fused_mlp.1}
  #allocation0 [shape = 'u32[]', space=smem, size = 0x4, offset = 0x4, fixed_abs, tag = 'smem constant byte address 0x4 - core index']
  #allocation1 [shape = 'u32[144,128]{1,0:T(1,128)}', space=vmem, size = 0x12000, scoped, tag = 'internal scratch']
  %s0 = inlined_call_operand.vmem [shape: bf16[8,32], index: 0, kind: input, shape index: {}]
  %s1 = inlined_call_operand.hbm [shape: bf16[32,128], index: 1, kind: input, shape index: {}]
  %s2 = inlined_call_operand.vmem [shape: f32[1,128], index: 2, kind: input, shape index: {}]
  %s3 = inlined_call_operand.hbm [shape: bf16[128,128], index: 3, kind: input, shape index: {}]
  %s4 = inlined_call_operand.vmem [shape: f32[1,128], index: 4, kind: input, shape index: {}]
  %s5 = inlined_call_operand.hbm [shape: bf16[128,128], index: 5, kind: input, shape index: {}]
  %s6 = inlined_call_operand.vmem [shape: f32[1,128], index: 6, kind: input, shape index: {}]
  %s7 = inlined_call_operand.hbm [shape: f32[8,128], index: 7, kind: output, shape index: {}]
  %s8 = sld [smem:[#allocation0]]
  $region50: #{fused_mlp.1} parent=0
    _
  %s10 = ssub.s32 1, %s8
  %s11 = scalar_select 0, %s10, %s8
  $region1: #{fused_mlp.1} parent=0
    #allocation2 [shape = 'u8[8192]{0}', space=vmem, size = 0x2000, scoped, tag = 'input window, operand 1, single buffered']
    #allocation3 [shape = 's32[1]{0}', space=sflag, size = 0x4, scoped, tag = 'scoped memory for fused_mlp.1']
    #allocation4 [shape = 's32[1]{0}', space=sflag, size = 0x4, scoped, tag = 'scoped memory for fused_mlp.1']
    #allocation5 [shape = 'u8[32768]{0}', space=vmem, size = 0x8000, scoped, tag = 'input window, operand 3, single buffered']
    #allocation6 [shape = 's32[1]{0}', space=sflag, size = 0x4, scoped, tag = 'scoped memory for fused_mlp.1']
    #allocation7 [shape = 'u8[32768]{0}', space=vmem, size = 0x8000, scoped, tag = 'input window, operand 5, single buffered']
    #allocation8 [shape = 'u8[4096]{0}', space=vmem, size = 0x1000, scoped, tag = 'output window, operand 0, single buffered']
    %12 = vsyncpa [#allocation3], 0
    %13 = vsyncpa [#allocation6], 0
    %14 = vsyncpa [#allocation4], 0
    // Predicated region
    $region2: #{fused_mlp.1} parent=1 // pred_check
      _
    $region3: #{fused_mlp.1} parent=1 // pred_check_branch
      %16 = sbr.rel (0) target = $region5
    $region4: #{fused_mlp.1} parent=1 // pred_region
      _
    $region5: #{fused_mlp.1} parent=1 // pred_fallthru
      _
    // Predicated region
    $region6: #{fused_mlp.1} parent=1 // pred_check
      _
    $region7: #{fused_mlp.1} parent=1 // pred_check_branch
      %18 = sbr.rel (0) target = $region9
    $region8: #{fused_mlp.1} parent=1 // pred_region
      %s20 = ssub.s32 256, 256
      %21 = vsyncadd [#allocation3], %s20
      %s22 = sshll.u32 [#allocation2], 4
      %s23 = int_to_ptr.vmem [resolvable:$true] %s22
      %28 = dma.hbm_to_vmem [thread:$0]  %s1, 256, %s23, [#allocation3], 64, 64, 4
    $region9: #{fused_mlp.1} parent=1 // pred_fallthru
      _
    // Predicated region
    $region10: #{fused_mlp.1} parent=1 // pred_check
      _
    $region11: #{fused_mlp.1} parent=1 // pred_check_branch
      %30 = sbr.rel (0) target = $region13
    $region12: #{fused_mlp.1} parent=1 // pred_region
      _
    $region13: #{fused_mlp.1} parent=1 // pred_fallthru
      _
    // Predicated region
    $region14: #{fused_mlp.1} parent=1 // pred_check
      _
    $region15: #{fused_mlp.1} parent=1 // pred_check_branch
      %32 = sbr.rel (0) target = $region17
    $region16: #{fused_mlp.1} parent=1 // pred_region
      %s34 = ssub.s32 1024, 1024
      %35 = vsyncadd [#allocation6], %s34
      %s36 = sshll.u32 [#allocation5], 4
      %s37 = int_to_ptr.vmem [resolvable:$true] %s36
      %42 = dma.hbm_to_vmem [thread:$0]  %s3, 1024, %s37, [#allocation6], 64, 64, 4
    $region17: #{fused_mlp.1} parent=1 // pred_fallthru
      _
    // Predicated region
    $region18: #{fused_mlp.1} parent=1 // pred_check
      _
    $region19: #{fused_mlp.1} parent=1 // pred_check_branch
      %44 = sbr.rel (0) target = $region21
    $region20: #{fused_mlp.1} parent=1 // pred_region
      _
    $region21: #{fused_mlp.1} parent=1 // pred_fallthru
      _
    // Predicated region
    $region22: #{fused_mlp.1} parent=1 // pred_check
      _
    $region23: #{fused_mlp.1} parent=1 // pred_check_branch
      %46 = sbr.rel (0) target = $region25
    $region24: #{fused_mlp.1} parent=1 // pred_region
      %s48 = ssub.s32 1024, 1024
      %49 = vsyncadd [#allocation6], %s48
      %s50 = sshll.u32 [#allocation7], 4
      %s51 = int_to_ptr.vmem [resolvable:$true] %s50
      %56 = dma.hbm_to_vmem [thread:$0]  %s5, 1024, %s51, [#allocation6], 64, 64, 4
    $region25: #{fused_mlp.1} parent=1 // pred_fallthru
      _
    // Predicated region
    $region26: #{fused_mlp.1} parent=1 // pred_check
      _
    $region27: #{fused_mlp.1} parent=1 // pred_check_branch
      %58 = sbr.rel (0) target = $region29
    $region28: #{fused_mlp.1} parent=1 // pred_region
      _
    $region29: #{fused_mlp.1} parent=1 // pred_fallthru
      _
    // Predicated region
    $region30: #{fused_mlp.1} parent=1 // pred_check
      _
    $region31: #{fused_mlp.1} parent=1 // pred_check_branch
      %60 = sbr.rel (0) target = $region33
    $region32: #{fused_mlp.1} parent=1 // pred_region
      %61 = dma.done [#allocation3], 256
    $region33: #{fused_mlp.1} parent=1 // pred_fallthru
      _
    // Predicated region
    $region34: #{fused_mlp.1} parent=1 // pred_check
      _
    $region35: #{fused_mlp.1} parent=1 // pred_check_branch
      %63 = sbr.rel (0) target = $region37
    $region36: #{fused_mlp.1} parent=1 // pred_region
      %64 = dma.done [#allocation6], 1024
    $region37: #{fused_mlp.1} parent=1 // pred_fallthru
      _
    // Predicated region
    $region38: #{fused_mlp.1} parent=1 // pred_check
      _
    $region39: #{fused_mlp.1} parent=1 // pred_check_branch
      %66 = sbr.rel (0) target = $region41
    $region40: #{fused_mlp.1} parent=1 // pred_region
      %67 = dma.done [#allocation6], 1024
    $region41: #{fused_mlp.1} parent=1 // pred_fallthru
      _
    %v69 = vld [vmem:[%s0] sm:$0xf]
    %v70 = vld [vmem:[#allocation2] sm:$0xf]
    %v71 = vld [vmem:[#allocation2 + $0x4] sm:$0xf]
    %v72 = vld [vmem:[#allocation2 + $0x8] sm:$0xf]
    %v73 = vld [vmem:[#allocation2 + $0xc] sm:$0xf]
    %v74 = vld [vmem:[%s2] sm:$0x1]
    %v76 = vlaneseq
    %v77 = vshrl.u32 %v76, 7
    %v78 = vsub.s32 0, %v77
    %v79 = vrot.slane %v74, %v78
    %v85 = vunpack.c.l.b16 %v70
    %v86 = vunpack.c.l.b16 %v71
    %v87 = vunpack.c.l.b16 %v72
    %v88 = vunpack.c.l.b16 %v73
    %v89 = vpack.c.b16 %v86, %v85
    %v90 = vpack.c.b16 %v88, %v87
    %vm93 = vcmask 261120
    %v95 = vsel %vm93, %v69, 0
    %97 = vmatprep.subr.bf16.mxu0 0
    %98 = vmatpush1.bf16.msra.mxu0 0
    %99 = vmatprep.subr.bf16.mxu0 0
    %100 = vmatpush1.bf16.msra.mxu0 0
    %101 = vmatprep.subr.bf16.mxu0 0
    %102 = vmatpush1.bf16.msra.mxu0 0
    %103 = vmatprep.subr.bf16.mxu0 0
    %104 = vmatpush1.bf16.msra.mxu0 0
    %105 = vmatprep.subr.bf16.mxu0 0
    %106 = vmatpush1.bf16.msra.mxu0 0
    %107 = vmatprep.subr.bf16.mxu0 0
    %108 = vmatpush1.bf16.msra.mxu0 0
    %109 = vmatprep.subr.bf16.mxu0 0
    %110 = vmatpush1.bf16.msra.mxu0 %v90
    %111 = vmatprep.subr.bf16.mxu0 0
    %112 = vmatpush1.bf16.msra.mxu0 %v89
    %113 = vmatprep.subr.bf16.mxu0 0
    %114 = vmatpush2.bf16.msra.mxu0 0
    %115 = vmatprep.subr.bf16.mxu0 0
    %116 = vmatpush2.bf16.msra.mxu0 0
    %117 = vmatprep.subr.bf16.mxu0 0
    %118 = vmatpush2.bf16.msra.mxu0 0
    %119 = vmatprep.subr.bf16.mxu0 0
    %120 = vmatpush2.bf16.msra.mxu0 0
    %121 = vmatprep.subr.bf16.mxu0 0
    %122 = vmatpush2.bf16.msra.mxu0 0
    %123 = vmatprep.subr.bf16.mxu0 0
    %124 = vmatpush2.bf16.msra.mxu0 0
    %125 = vmatprep.subr.bf16.mxu0 0
    %126 = vmatpush2.bf16.msra.mxu0 0
    %127 = vmatprep.subr.bf16.mxu0 0
    %128 = vmatpush2.bf16.msra.mxu0 0
    %129 = vmatprep.mubr.bf16.mxu0 0
    %130 = vmatmul.mubr.bf16.gmra.mxu0 %v95
    %v131 = vpop.f32.mrf.mxu0
    %v132 = vadd.f32 %v79, %v131
    %v133 = vpop.f32.mrf.mxu0
    %v134 = vpop.f32.mrf.mxu0
    %v135 = vpop.f32.mrf.mxu0
    %136 = vdwg.mxu0
    %v137 = vmax.f32 %v132, 0.0
    %v138 = vpack.c.bf16 %v137, %v137
    %v139 = vld [vmem:[#allocation5] sm:$0xf]
    %v140 = vld [vmem:[#allocation5 + $0x4] sm:$0xf]
    %v141 = vld [vmem:[#allocation5 + $0x8] sm:$0xf]
    %v142 = vld [vmem:[#allocation5 + $0xc] sm:$0xf]
    %v143 = vld [vmem:[#allocation5 + $0x10] sm:$0xf]
    %v144 = vld [vmem:[#allocation5 + $0x14] sm:$0xf]
    %v145 = vld [vmem:[#allocation5 + $0x18] sm:$0xf]
    %v146 = vld [vmem:[#allocation5 + $0x1c] sm:$0xf]
    %v147 = vld [vmem:[#allocation5 + $0x20] sm:$0xf]
    %v148 = vld [vmem:[#allocation5 + $0x24] sm:$0xf]
    %v149 = vld [vmem:[#allocation5 + $0x28] sm:$0xf]
    %v150 = vld [vmem:[#allocation5 + $0x2c] sm:$0xf]
    %v151 = vld [vmem:[#allocation5 + $0x30] sm:$0xf]
    %v152 = vld [vmem:[#allocation5 + $0x34] sm:$0xf]
    %v153 = vld [vmem:[#allocation5 + $0x38] sm:$0xf]
    %v154 = vld [vmem:[#allocation5 + $0x3c] sm:$0xf]
    %v155 = vld [vmem:[%s4] sm:$0x1]
    %v157 = vlaneseq
    %v158 = vshrl.u32 %v157, 7
    %v159 = vsub.s32 0, %v158
    %v160 = vrot.slane %v155, %v159
    %v178 = vunpack.c.l.b16 %v139
    %v179 = vunpack.c.l.b16 %v140
    %v180 = vunpack.c.l.b16 %v141
    %v181 = vunpack.c.l.b16 %v142
    %v182 = vunpack.c.l.b16 %v143
    %v183 = vunpack.c.l.b16 %v144
    %v184 = vunpack.c.l.b16 %v145
    %v185 = vunpack.c.l.b16 %v146
    %v186 = vunpack.c.l.b16 %v147
    %v187 = vunpack.c.l.b16 %v148
    %v188 = vunpack.c.l.b16 %v149
    %v189 = vunpack.c.l.b16 %v150
    %v190 = vunpack.c.l.b16 %v151
    %v191 = vunpack.c.l.b16 %v152
    %v192 = vunpack.c.l.b16 %v153
    %v193 = vunpack.c.l.b16 %v154
    %v194 = vpack.c.b16 %v179, %v178
    %v195 = vpack.c.b16 %v181, %v180
    %v196 = vpack.c.b16 %v183, %v182
    %v197 = vpack.c.b16 %v185, %v184
    %v198 = vpack.c.b16 %v187, %v186
    %v199 = vpack.c.b16 %v189, %v188
    %v200 = vpack.c.b16 %v191, %v190
    %v201 = vpack.c.b16 %v193, %v192
    %210 = vmatprep.subr.bf16.mxu0 0
    %211 = vmatpush1.bf16.msra.mxu0 %v201
    %212 = vmatprep.subr.bf16.mxu0 0
    %213 = vmatpush1.bf16.msra.mxu0 %v200
    %214 = vmatprep.subr.bf16.mxu0 0
    %215 = vmatpush1.bf16.msra.mxu0 %v199
    %216 = vmatprep.subr.bf16.mxu0 0
    %217 = vmatpush1.bf16.msra.mxu0 %v198
    %218 = vmatprep.subr.bf16.mxu0 0
    %219 = vmatpush1.bf16.msra.mxu0 %v197
    %220 = vmatprep.subr.bf16.mxu0 0
    %221 = vmatpush1.bf16.msra.mxu0 %v196
    %222 = vmatprep.subr.bf16.mxu0 0
    %223 = vmatpush1.bf16.msra.mxu0 %v195
    %224 = vmatprep.subr.bf16.mxu0 0
    %225 = vmatpush1.bf16.msra.mxu0 %v194
    %226 = vmatprep.subr.bf16.mxu0 0
    %227 = vmatpush2.bf16.msra.mxu0 0
    %228 = vmatprep.subr.bf16.mxu0 0
    %229 = vmatpush2.bf16.msra.mxu0 0
    %230 = vmatprep.subr.bf16.mxu0 0
    %231 = vmatpush2.bf16.msra.mxu0 0
    %232 = vmatprep.subr.bf16.mxu0 0
    %233 = vmatpush2.bf16.msra.mxu0 0
    %234 = vmatprep.subr.bf16.mxu0 0
    %235 = vmatpush2.bf16.msra.mxu0 0
    %236 = vmatprep.subr.bf16.mxu0 0
    %237 = vmatpush2.bf16.msra.mxu0 0
    %238 = vmatprep.subr.bf16.mxu0 0
    %239 = vmatpush2.bf16.msra.mxu0 0
    %240 = vmatprep.subr.bf16.mxu0 0
    %241 = vmatpush2.bf16.msra.mxu0 0
    %242 = vmatprep.mubr.bf16.mxu0 0
    %243 = vmatmul.mubr.bf16.gmra.mxu0 %v138
    %v244 = vpop.f32.mrf.mxu0
    %v245 = vadd.f32 %v160, %v244
    %v246 = vpop.f32.mrf.mxu0
    %v247 = vpop.f32.mrf.mxu0
    %v248 = vpop.f32.mrf.mxu0
    %249 = vdwg.mxu0
    %v250 = vmax.f32 %v245, 0.0
    %v251 = vpack.c.bf16 %v250, %v250
    %v252 = vld [vmem:[#allocation7] sm:$0xf]
    %v253 = vld [vmem:[#allocation7 + $0x4] sm:$0xf]
    %v254 = vld [vmem:[#allocation7 + $0x8] sm:$0xf]
    %v255 = vld [vmem:[#allocation7 + $0xc] sm:$0xf]
    %v256 = vld [vmem:[#allocation7 + $0x10] sm:$0xf]
    %v257 = vld [vmem:[#allocation7 + $0x14] sm:$0xf]
    %v258 = vld [vmem:[#allocation7 + $0x18] sm:$0xf]
    %v259 = vld [vmem:[#allocation7 + $0x1c] sm:$0xf]
    %v260 = vld [vmem:[#allocation7 + $0x20] sm:$0xf]
    %v261 = vld [vmem:[#allocation7 + $0x24] sm:$0xf]
    %v262 = vld [vmem:[#allocation7 + $0x28] sm:$0xf]
    %v263 = vld [vmem:[#allocation7 + $0x2c] sm:$0xf]
    %v264 = vld [vmem:[#allocation7 + $0x30] sm:$0xf]
    %v265 = vld [vmem:[#allocation7 + $0x34] sm:$0xf]
    %v266 = vld [vmem:[#allocation7 + $0x38] sm:$0xf]
    %v267 = vld [vmem:[#allocation7 + $0x3c] sm:$0xf]
    %v268 = vld [vmem:[%s6] sm:$0x1]
    %v270 = vlaneseq
    %v271 = vshrl.u32 %v270, 7
    %v272 = vsub.s32 0, %v271
    %v273 = vrot.slane %v268, %v272
    %v291 = vunpack.c.l.b16 %v252
    %v292 = vunpack.c.l.b16 %v253
    %v293 = vunpack.c.l.b16 %v254
    %v294 = vunpack.c.l.b16 %v255
    %v295 = vunpack.c.l.b16 %v256
    %v296 = vunpack.c.l.b16 %v257
    %v297 = vunpack.c.l.b16 %v258
    %v298 = vunpack.c.l.b16 %v259
    %v299 = vunpack.c.l.b16 %v260
    %v300 = vunpack.c.l.b16 %v261
    %v301 = vunpack.c.l.b16 %v262
    %v302 = vunpack.c.l.b16 %v263
    %v303 = vunpack.c.l.b16 %v264
    %v304 = vunpack.c.l.b16 %v265
    %v305 = vunpack.c.l.b16 %v266
    %v306 = vunpack.c.l.b16 %v267
    %v307 = vpack.c.b16 %v292, %v291
    %v308 = vpack.c.b16 %v294, %v293
    %v309 = vpack.c.b16 %v296, %v295
    %v310 = vpack.c.b16 %v298, %v297
    %v311 = vpack.c.b16 %v300, %v299
    %v312 = vpack.c.b16 %v302, %v301
    %v313 = vpack.c.b16 %v304, %v303
    %v314 = vpack.c.b16 %v306, %v305
    %323 = vmatprep.subr.bf16.mxu0 0
    %324 = vmatpush1.bf16.msra.mxu0 %v314
    %325 = vmatprep.subr.bf16.mxu0 0
    %326 = vmatpush1.bf16.msra.mxu0 %v313
    %327 = vmatprep.subr.bf16.mxu0 0
    %328 = vmatpush1.bf16.msra.mxu0 %v312
    %329 = vmatprep.subr.bf16.mxu0 0
    %330 = vmatpush1.bf16.msra.mxu0 %v311
    %331 = vmatprep.subr.bf16.mxu0 0
    %332 = vmatpush1.bf16.msra.mxu0 %v310
    %333 = vmatprep.subr.bf16.mxu0 0
    %334 = vmatpush1.bf16.msra.mxu0 %v309
    %335 = vmatprep.subr.bf16.mxu0 0
    %336 = vmatpush1.bf16.msra.mxu0 %v308
    %337 = vmatprep.subr.bf16.mxu0 0
    %338 = vmatpush1.bf16.msra.mxu0 %v307
    %339 = vmatprep.subr.bf16.mxu0 0
    %340 = vmatpush2.bf16.msra.mxu0 0
    %341 = vmatprep.subr.bf16.mxu0 0
    %342 = vmatpush2.bf16.msra.mxu0 0
    %343 = vmatprep.subr.bf16.mxu0 0
    %344 = vmatpush2.bf16.msra.mxu0 0
    %345 = vmatprep.subr.bf16.mxu0 0
    %346 = vmatpush2.bf16.msra.mxu0 0
    %347 = vmatprep.subr.bf16.mxu0 0
    %348 = vmatpush2.bf16.msra.mxu0 0
    %349 = vmatprep.subr.bf16.mxu0 0
    %350 = vmatpush2.bf16.msra.mxu0 0
    %351 = vmatprep.subr.bf16.mxu0 0
    %352 = vmatpush2.bf16.msra.mxu0 0
    %353 = vmatprep.subr.bf16.mxu0 0
    %354 = vmatpush2.bf16.msra.mxu0 0
    %355 = vmatprep.mubr.bf16.mxu0 0
    %356 = vmatmul.mubr.bf16.gmra.mxu0 %v251
    %v357 = vpop.f32.mrf.mxu0
    %v358 = vadd.f32 %v273, %v357
    %v359 = vpop.f32.mrf.mxu0
    %v360 = vpop.f32.mrf.mxu0
    %v361 = vpop.f32.mrf.mxu0
    %362 = vdwg.mxu0
    %363 = vst [vmem:[#allocation8] sm:$0xff] %v358
    // Predicated region
    $region42: #{fused_mlp.1} parent=1 // pred_check
      _
    $region43: #{fused_mlp.1} parent=1 // pred_check_branch
      %365 = sbr.rel (0) target = $region45
    $region44: #{fused_mlp.1} parent=1 // pred_region
      %s367 = ssub.s32 128, 128
      %368 = vsyncadd [#allocation4], %s367
      %s370 = sshll.u32 [#allocation8], 4
      %s371 = int_to_ptr.vmem [resolvable:$true] %s370
      %373 = dma.vmem_to_hbm [thread:$0]  %s371, 128, %s7, [#allocation4]
    $region45: #{fused_mlp.1} parent=1 // pred_fallthru
      _
    // Predicated region
    $region46: #{fused_mlp.1} parent=1 // pred_check
      _
    $region47: #{fused_mlp.1} parent=1 // pred_check_branch
      %375 = sbr.rel (0) target = $region49
    $region48: #{fused_mlp.1} parent=1 // pred_region
      %376 = dma.done [#allocation4], 128
    $region49: #{fused_mlp.1} parent=1 // pred_fallthru
      _
    %377 = vsyncpa [#allocation3], 1
    %378 = vsyncpa [#allocation6], 1
    %379 = vsyncpa [#allocation4], 1

</llo_original>
